<compile_context>
chip_gen: v7x
topology: tpu7x:2x2x1
jax: 0.10.0
libtpu: 0.0.40
codegen_flags: <defaults>
</compile_context>

<pallas_src>
import functools

import jax
import jax.numpy as jnp
from jax.experimental import pallas as pl
from jax.experimental.pallas import tpu as pltpu


# ----------------------------------------------------------------------------
# Fused Pallas kernel (one grid step = one batch element)
# ----------------------------------------------------------------------------
def _agereg_fused_kernel(p_ref, wc_ref, bc_ref, w1_ref, b1_ref, w2_ref, b2_ref,
                         o_ref, *, n_taps, n_pool, out_c, hidden):
    # ---- Conv2d(4->8, 3x3, pad=1) as one MXU matmul over ALL pool taps ----
    # p_ref[0]: [K_pad, n_taps * n_pool]  (column = tap * n_pool + pooled_pos, lane-dense)
    # wc_ref  : [out_c, K_pad]
    conv = jnp.dot(wc_ref[...], p_ref[0], preferred_element_type=jnp.float32)   # [OC, T*P]

    # ---- MaxPool2d(2): max over the 4 tap column-groups (in vregs, no HBM) ----
    pooled = conv[:, 0:n_pool]
    for t in range(1, n_taps):
        pooled = jnp.maximum(pooled, conv[:, t * n_pool:(t + 1) * n_pool])
    # bias + ReLU commute with the max (same bias for every tap, ReLU monotone)
    pooled = jnp.maximum(pooled + bc_ref[...], 0.0)                              # [OC, P]

    # ---- flatten (PyTorch NCHW order, folded into w1 prepack) + Linear(512, 32) ----
    # w1_ref: [P, OC*HIDDEN] with w1_ref[p, c*HIDDEN + j] = fc1_w[c*P + p, j]
    full = jnp.dot(pooled, w1_ref[...], preferred_element_type=jnp.float32)      # [OC, OC*HIDDEN]
    h = full[0:1, 0:hidden]
    for c in range(1, out_c):                    # block-diagonal extraction = the c-sum
        h = h + full[c:c + 1, c * hidden:(c + 1) * hidden]
    h = jnp.maximum(h + b1_ref[...], 0.0)                                        # [1, HIDDEN]

    # TODO(synk): ConstDropout is identity at inference (F.dropout, training=False);
    #             the frozen-Bernoulli-mask training path is not reproduced here.

    # ---- Linear(32, 1) as an elementwise mul + lane reduce (avoids a [1,K]x[K,1] matmul) ----
    y = jnp.sum(h * w2_ref[...], axis=1, keepdims=True) + b2_ref[...]            # [1, 1]
    o_ref[0] = y


# ----------------------------------------------------------------------------
# Host-side glue: im2col with pool-tap-grouped, lane-dense columns
# ----------------------------------------------------------------------------
def _im2col_pool_taps(x_nchw, k_pad):
    """[N, C, H, W] -> [N, K_pad, 4*Ho*Wo] patches.

    Row index k = c*9 + kh*3 + kw (matches conv_w.reshape(OC, C*9)); column index
    = (di*2+dj)*Ho*Wo + i*Wo + j, i.e. the 4 taps of each 2x2 pool window are
    grouped so the kernel can pool with lane-slice maxes.
    """
    x = jnp.transpose(x_nchw, (0, 2, 3, 1)).astype(jnp.float32)   # NHWC
    n, hh, ww, c = x.shape
    assert hh % 2 == 0 and ww % 2 == 0, "MaxPool2d(2) requires even H and W"
    ho, wo = hh // 2, ww // 2
    xp = jnp.pad(x, ((0, 0), (1, 1), (1, 1), (0, 0)))
    cols = jnp.stack(
        [xp[:, kh:kh + hh, kw:kw + ww, :] for kh in range(3) for kw in range(3)],
        axis=-1)                                                  # [N, H, W, C, 9]
    k = c * 9
    cols = cols.reshape(n, hh, ww, k)                             # k = c*9 + kh*3 + kw
    cols = cols.reshape(n, ho, 2, wo, 2, k)                       # (n, i, di, j, dj, k)
    cols = jnp.transpose(cols, (0, 5, 2, 4, 1, 3))                # (n, k, di, dj, i, j)
    cols = cols.reshape(n, k, 4 * ho * wo)                        # column = t*P + p
    cols = jnp.pad(cols, ((0, 0), (0, k_pad - k), (0, 0)))        # align contraction dim
    return cols                                                   # [N, K_pad, 4*P]


# ----------------------------------------------------------------------------
# Parameters (PyTorch layouts) + one-time prepack into kernel layouts
# ----------------------------------------------------------------------------
def init_params(key):
    k = jax.random.split(key, 6)
    in_c, out_c = 4, 8
    hidden, flat = 32, 8 * 8 * out_c  # 512 (pooled 8x8 spatial x 8 channels)
    return {
        "conv_w": 0.1 * jax.random.normal(k[0], (out_c, in_c, 3, 3), jnp.float32),
        "conv_b": 0.1 * jax.random.normal(k[1], (out_c,), jnp.float32),
        # fc1_w rows follow PyTorch's NCHW flatten order: q = c*(Ho*Wo) + i*Wo + j
        "fc1_w": 0.05 * jax.random.normal(k[2], (flat, hidden), jnp.float32),
        "fc1_b": 0.05 * jax.random.normal(k[3], (hidden,), jnp.float32),
        "fc2_w": 0.05 * jax.random.normal(k[4], (hidden, 1), jnp.float32),
        "fc2_b": 0.05 * jax.random.normal(k[5], (1,), jnp.float32),
    }


def prepack_params(params):
    """One-time repack of weights into the layouts the fused kernel consumes."""
    out_c, in_c, kh, kw = params["conv_w"].shape
    k = in_c * kh * kw
    k_pad = -(-k // 8) * 8                                         # 36 -> 40
    flat, hidden = params["fc1_w"].shape
    n_pool = flat // out_c                                         # Ho*Wo = 64
    wc = jnp.pad(params["conv_w"].reshape(out_c, k), ((0, 0), (0, k_pad - k)))
    w1 = params["fc1_w"].reshape(out_c, n_pool, hidden)            # [c, p, j]
    w1 = jnp.transpose(w1, (1, 0, 2)).reshape(n_pool, out_c * hidden)  # [p, c*H + j]
    return {
        "wc": wc,                                                  # [OC, K_pad]
        "bc": params["conv_b"].reshape(out_c, 1),                  # [OC, 1]
        "w1": w1,                                                  # [P, OC*HIDDEN] lane-dense
        "b1": params["fc1_b"].reshape(1, hidden),                  # [1, HIDDEN]
        "w2": params["fc2_w"].reshape(1, hidden),                  # [1, HIDDEN] (row form)
        "b2": params["fc2_b"].reshape(1, 1),                       # [1, 1]
    }


# ----------------------------------------------------------------------------
# Forward: a single pallas_call
# ----------------------------------------------------------------------------
@jax.jit
def agereg_forward(packed, x_nchw):
    n, _, hh, ww = x_nchw.shape
    ho, wo = hh // 2, ww // 2
    n_pool, n_taps = ho * wo, 4
    out_c, k_pad = packed["wc"].shape
    hidden = packed["b1"].shape[1]
    assert packed["w1"].shape == (n_pool, out_c * hidden)

    patches = _im2col_pool_taps(x_nchw, k_pad)                     # [N, K_pad, 4*P]

    kernel = functools.partial(
        _agereg_fused_kernel,
        n_taps=n_taps, n_pool=n_pool, out_c=out_c, hidden=hidden)

    out = pl.pallas_call(
        kernel,
        out_shape=jax.ShapeDtypeStruct((n, 1, 1), jnp.float32),
        grid_spec=pltpu.PrefetchScalarGridSpec(
            num_scalar_prefetch=0,
            grid=(n,),
            in_specs=[
                pl.BlockSpec((1, k_pad, n_taps * n_pool), lambda i: (i, 0, 0)),
                pl.BlockSpec((out_c, k_pad), lambda i: (0, 0)),
                pl.BlockSpec((out_c, 1), lambda i: (0, 0)),
                pl.BlockSpec((n_pool, out_c * hidden), lambda i: (0, 0)),
                pl.BlockSpec((1, hidden), lambda i: (0, 0)),
                pl.BlockSpec((1, hidden), lambda i: (0, 0)),
                pl.BlockSpec((1, 1), lambda i: (0, 0)),
            ],
            out_specs=pl.BlockSpec((1, 1, 1), lambda i: (i, 0, 0)),
        ),
        compiler_params=pltpu.CompilerParams(
            dimension_semantics=("parallel",)),   # shards batch over v7x's 2 TCs
    )(patches, packed["wc"], packed["bc"], packed["w1"], packed["b1"],
      packed["w2"], packed["b2"])
    return out.reshape(n, 1)


# ----------------------------------------------------------------------------
# Pure-JAX reference (PyTorch semantics) for a correctness check
# ----------------------------------------------------------------------------
def reference_forward(params, x_nchw):
    hp = jax.lax.Precision.HIGHEST
    x = x_nchw.astype(jnp.float32)
    conv = jax.lax.conv_general_dilated(
        x, params["conv_w"], window_strides=(1, 1), padding=((1, 1), (1, 1)),
        dimension_numbers=("NCHW", "OIHW", "NCHW"), precision=hp)
    conv = jnp.maximum(conv + params["conv_b"][None, :, None, None], 0.0)
    n, oc, hh, ww = conv.shape
    pooled = conv.reshape(n, oc, hh // 2, 2, ww // 2, 2).max(axis=(3, 5))
    flat = pooled.reshape(n, -1)                                   # PyTorch NCHW flatten
    h = jnp.maximum(jnp.dot(flat, params["fc1_w"], precision=hp) + params["fc1_b"], 0.0)
    # ConstDropout: identity at inference
    return jnp.dot(h, params["fc2_w"], precision=hp) + params["fc2_b"]


if __name__ == "__main__":
    key = jax.random.PRNGKey(0)
    pkey, xkey = jax.random.split(key)
    params = init_params(pkey)
    packed = prepack_params(params)

    x = jax.random.normal(xkey, (2, 4, 16, 16), jnp.float32)       # NCHW like PyTorch
    out = agereg_forward(packed, x)
    jax.block_until_ready(out)

    assert out.shape == (2, 1) and out.dtype == jnp.float32
    ref = reference_forward(params, x)
    err = float(jnp.max(jnp.abs(out - ref)))
    assert err < 5e-3, f"mismatch vs reference: {err}"
    print("KERNEL_OK")
</pallas_src>

<mosaic_0001>
module attributes {stable_mosaic.version = 11 : i64} {
  func.func @_agereg_fused_kernel(%arg0: i32, %arg1: memref<1x40x256xf32, #tpu.memory_space<vmem>>, %arg2: memref<8x40xf32, #tpu.memory_space<vmem>>, %arg3: memref<8x1xf32, #tpu.memory_space<vmem>>, %arg4: memref<64x256xf32, #tpu.memory_space<vmem>>, %arg5: memref<1x32xf32, #tpu.memory_space<vmem>>, %arg6: memref<1x32xf32, #tpu.memory_space<vmem>>, %arg7: memref<1x1xf32, #tpu.memory_space<vmem>>, %arg8: memref<1x1x1xf32, #tpu.memory_space<vmem>>) attributes {dimension_semantics = [#tpu.dimension_semantics<parallel>], iteration_bounds = array<i64: 2>, scalar_prefetch = 0 : i64, scratch_operands = 0 : i64, tpu.core_type = #tpu.core_type<tc>, window_params = [{transform_indices = @transform_0, window_bounds = array<i64: 1, 40, 256>}, {pipeline_mode = #tpu.pipeline_mode<synchronous>, transform_indices = @transform_1, window_bounds = array<i64: 8, 40>}, {pipeline_mode = #tpu.pipeline_mode<synchronous>, transform_indices = @transform_2, window_bounds = array<i64: 8, 1>}, {pipeline_mode = #tpu.pipeline_mode<synchronous>, transform_indices = @transform_3, window_bounds = array<i64: 64, 256>}, {pipeline_mode = #tpu.pipeline_mode<synchronous>, transform_indices = @transform_4, window_bounds = array<i64: 1, 32>}, {pipeline_mode = #tpu.pipeline_mode<synchronous>, transform_indices = @transform_5, window_bounds = array<i64: 1, 32>}, {pipeline_mode = #tpu.pipeline_mode<synchronous>, transform_indices = @transform_6, window_bounds = array<i64: 1, 1>}, {transform_indices = @transform_7, window_bounds = array<i64: 1, 1, 1>}]} {
    %c0 = arith.constant 0 : index
    %c0_0 = arith.constant 0 : index
    %0 = vector.load %arg2[%c0, %c0_0] : memref<8x40xf32, #tpu.memory_space<vmem>>, vector<8x40xf32>
    %c0_1 = arith.constant 0 : index
    %c0_2 = arith.constant 0 : index
    %c0_3 = arith.constant 0 : index
    %1 = vector.load %arg1[%c0_1, %c0_2, %c0_3] : memref<1x40x256xf32, #tpu.memory_space<vmem>>, vector<1x40x256xf32>
    %2 = vector.shape_cast %1 : vector<1x40x256xf32> to vector<40x256xf32>
    %cst = arith.constant dense<0.000000e+00> : vector<8x256xf32>
    %3 = tpu.matmul %0, %2, %cst {dimension_numbers = #tpu.dot_dimension_numbers<[1], [0], [0], [1], [0, 0, 1, 1], [], []>} : vector<8x40xf32>, vector<40x256xf32>, vector<8x256xf32> -> vector<8x256xf32>
    %4 = vector.extract_strided_slice %3 {offsets = [0, 0], sizes = [8, 64], strides = [1, 1]} : vector<8x256xf32> to vector<8x64xf32>
    %5 = vector.extract_strided_slice %3 {offsets = [0, 64], sizes = [8, 64], strides = [1, 1]} : vector<8x256xf32> to vector<8x64xf32>
    %6 = arith.maximumf %4, %5 : vector<8x64xf32>
    %7 = vector.extract_strided_slice %3 {offsets = [0, 128], sizes = [8, 64], strides = [1, 1]} : vector<8x256xf32> to vector<8x64xf32>
    %8 = arith.maximumf %6, %7 : vector<8x64xf32>
    %9 = vector.extract_strided_slice %3 {offsets = [0, 192], sizes = [8, 64], strides = [1, 1]} : vector<8x256xf32> to vector<8x64xf32>
    %10 = arith.maximumf %8, %9 : vector<8x64xf32>
    %c0_4 = arith.constant 0 : index
    %c0_5 = arith.constant 0 : index
    %11 = vector.load %arg3[%c0_4, %c0_5] : memref<8x1xf32, #tpu.memory_space<vmem>>, vector<8x1xf32>
    %12 = vector.broadcast %11 : vector<8x1xf32> to vector<8x64xf32>
    %13 = arith.addf %10, %12 : vector<8x64xf32>
    %cst_6 = arith.constant 0.000000e+00 : f32
    %14 = vector.broadcast %cst_6 : f32 to vector<8x64xf32>
    %15 = arith.maximumf %13, %14 : vector<8x64xf32>
    %c0_7 = arith.constant 0 : index
    %c0_8 = arith.constant 0 : index
    %16 = vector.load %arg4[%c0_7, %c0_8] : memref<64x256xf32, #tpu.memory_space<vmem>>, vector<64x256xf32>
    %cst_9 = arith.constant dense<0.000000e+00> : vector<8x256xf32>
    %17 = tpu.matmul %15, %16, %cst_9 {dimension_numbers = #tpu.dot_dimension_numbers<[1], [0], [0], [1], [0, 0, 1, 1], [], []>} : vector<8x64xf32>, vector<64x256xf32>, vector<8x256xf32> -> vector<8x256xf32>
    %18 = vector.extract_strided_slice %17 {offsets = [0, 0], sizes = [1, 32], strides = [1, 1]} : vector<8x256xf32> to vector<1x32xf32>
    %19 = vector.extract_strided_slice %17 {offsets = [1, 32], sizes = [1, 32], strides = [1, 1]} : vector<8x256xf32> to vector<1x32xf32>
    %20 = arith.addf %18, %19 : vector<1x32xf32>
    %21 = vector.extract_strided_slice %17 {offsets = [2, 64], sizes = [1, 32], strides = [1, 1]} : vector<8x256xf32> to vector<1x32xf32>
    %22 = arith.addf %20, %21 : vector<1x32xf32>
    %23 = vector.extract_strided_slice %17 {offsets = [3, 96], sizes = [1, 32], strides = [1, 1]} : vector<8x256xf32> to vector<1x32xf32>
    %24 = arith.addf %22, %23 : vector<1x32xf32>
    %25 = vector.extract_strided_slice %17 {offsets = [4, 128], sizes = [1, 32], strides = [1, 1]} : vector<8x256xf32> to vector<1x32xf32>
    %26 = arith.addf %24, %25 : vector<1x32xf32>
    %27 = vector.extract_strided_slice %17 {offsets = [5, 160], sizes = [1, 32], strides = [1, 1]} : vector<8x256xf32> to vector<1x32xf32>
    %28 = arith.addf %26, %27 : vector<1x32xf32>
    %29 = vector.extract_strided_slice %17 {offsets = [6, 192], sizes = [1, 32], strides = [1, 1]} : vector<8x256xf32> to vector<1x32xf32>
    %30 = arith.addf %28, %29 : vector<1x32xf32>
    %31 = vector.extract_strided_slice %17 {offsets = [7, 224], sizes = [1, 32], strides = [1, 1]} : vector<8x256xf32> to vector<1x32xf32>
    %32 = arith.addf %30, %31 : vector<1x32xf32>
    %c0_10 = arith.constant 0 : index
    %c0_11 = arith.constant 0 : index
    %33 = vector.load %arg5[%c0_10, %c0_11] : memref<1x32xf32, #tpu.memory_space<vmem>>, vector<1x32xf32>
    %34 = arith.addf %32, %33 : vector<1x32xf32>
    %cst_12 = arith.constant 0.000000e+00 : f32
    %35 = vector.broadcast %cst_12 : f32 to vector<1x32xf32>
    %36 = arith.maximumf %34, %35 : vector<1x32xf32>
    %c0_13 = arith.constant 0 : index
    %c0_14 = arith.constant 0 : index
    %37 = vector.load %arg6[%c0_13, %c0_14] : memref<1x32xf32, #tpu.memory_space<vmem>>, vector<1x32xf32>
    %38 = arith.mulf %36, %37 : vector<1x32xf32>
    %cst_15 = arith.constant dense<0.000000e+00> : vector<1xf32>
    %39 = vector.multi_reduction <add>, %38, %cst_15 [1] : vector<1x32xf32> to vector<1xf32>
    %40 = vector.shape_cast %39 : vector<1xf32> to vector<1x1xf32>
    %c0_16 = arith.constant 0 : index
    %c0_17 = arith.constant 0 : index
    %41 = vector.load %arg7[%c0_16, %c0_17] : memref<1x1xf32, #tpu.memory_space<vmem>>, vector<1x1xf32>
    %42 = arith.addf %40, %41 : vector<1x1xf32>
    %c0_18 = arith.constant 0 : index
    %c0_19 = arith.constant 0 : index
    %c0_20 = arith.constant 0 : index
    %43 = vector.load %arg8[%c0_18, %c0_19, %c0_20] : memref<1x1x1xf32, #tpu.memory_space<vmem>>, vector<1x1x1xf32>
    %44 = vector.shape_cast %43 : vector<1x1x1xf32> to vector<1x1xf32>
    %45 = vector.shape_cast %42 : vector<1x1xf32> to vector<1x1x1xf32>
    tpu.vector_store %arg8[%c0_18, %c0_19, %c0_20], %45 {strides = array<i32>} : memref<1x1x1xf32, #tpu.memory_space<vmem>>, vector<1x1x1xf32>,
    return
  }
  func.func @transform_0(%arg0: i32) -> (i32, i32, i32) {
    %c0_i32 = arith.constant 0 : i32
    %c0_i32_0 = arith.constant 0 : i32
    %c0_i32_1 = arith.constant 0 : i32
    return %arg0, %c0_i32, %c0_i32_0 : i32, i32, i32
  }
  func.func @transform_1(%arg0: i32) -> (i32, i32) {
    %c0_i32 = arith.constant 0 : i32
    %c0_i32_0 = arith.constant 0 : i32
    %c0_i32_1 = arith.constant 0 : i32
    return %c0_i32, %c0_i32_0 : i32, i32
  }
  func.func @transform_2(%arg0: i32) -> (i32, i32) {
    %c0_i32 = arith.constant 0 : i32
    %c0_i32_0 = arith.constant 0 : i32
    %c0_i32_1 = arith.constant 0 : i32
    return %c0_i32, %c0_i32_0 : i32, i32
  }
  func.func @transform_3(%arg0: i32) -> (i32, i32) {
    %c0_i32 = arith.constant 0 : i32
    %c0_i32_0 = arith.constant 0 : i32
    %c0_i32_1 = arith.constant 0 : i32
    return %c0_i32, %c0_i32_0 : i32, i32
  }
  func.func @transform_4(%arg0: i32) -> (i32, i32) {
    %c0_i32 = arith.constant 0 : i32
    %c0_i32_0 = arith.constant 0 : i32
    %c0_i32_1 = arith.constant 0 : i32
    return %c0_i32, %c0_i32_0 : i32, i32
  }
  func.func @transform_5(%arg0: i32) -> (i32, i32) {
    %c0_i32 = arith.constant 0 : i32
    %c0_i32_0 = arith.constant 0 : i32
    %c0_i32_1 = arith.constant 0 : i32
    return %c0_i32, %c0_i32_0 : i32, i32
  }
  func.func @transform_6(%arg0: i32) -> (i32, i32) {
    %c0_i32 = arith.constant 0 : i32
    %c0_i32_0 = arith.constant 0 : i32
    %c0_i32_1 = arith.constant 0 : i32
    return %c0_i32, %c0_i32_0 : i32, i32
  }
  func.func @transform_7(%arg0: i32) -> (i32, i32, i32) {
    %c0_i32 = arith.constant 0 : i32
    %c0_i32_0 = arith.constant 0 : i32
    %c0_i32_1 = arith.constant 0 : i32
    return %arg0, %c0_i32, %c0_i32_0 : i32, i32, i32
  }
}

</mosaic_0001>

<llo_original>
// kernel: agereg_forward.1
$region0: #{agereg_forward.1}
  #allocation0 [shape = 'u32[]', space=smem, size = 0x4, offset = 0x4, fixed_abs, tag = 'smem constant byte address 0x4 - core index']
  #allocation1 [shape = 'u32[144,128]{1,0:T(1,128)}', space=vmem, size = 0x12000, scoped, tag = 'internal scratch']
  #allocation2 [shape = 'f32[1,1]{1,0:T(1,128)S(1)}', space=vmem, size = 0x200, scoped, tag = 'scoped memory for agereg_forward.1']
  %s0 = inlined_call_operand.vmem [shape: f32[2,40,256], index: 0, kind: input, shape index: {}]
  %s1 = inlined_call_operand.vmem [shape: f32[8,40], index: 1, kind: input, shape index: {}]
  %s2 = inlined_call_operand.vmem [shape: f32[8,1], index: 2, kind: input, shape index: {}]
  %s3 = inlined_call_operand.vmem [shape: f32[64,256], index: 3, kind: input, shape index: {}]
  %s4 = inlined_call_operand.vmem [shape: f32[1,32], index: 4, kind: input, shape index: {}]
  %s5 = inlined_call_operand.vmem [shape: f32[1,32], index: 5, kind: input, shape index: {}]
  %s6 = inlined_call_operand.<no memory space> [shape: f32[1,1], index: 6, kind: input, shape index: {}]
  %s7 = inlined_call_operand.vmem [shape: f32[2,1,1], index: 7, kind: output, shape index: {}]
  %s8 = sld [smem:[#allocation0]]
  $region61: #{agereg_forward.1} parent=0
    _
  %s10 = ssub.s32 1, %s8
  %s11 = scalar_select 0, %s10, %s8
  %v12 = vstv %s6
  %13 = vst [vmem:[#allocation2] sm:$0x1] %v12
  loop: start=0, step=1, limit=4
  $region2: #{agereg_forward.1} parent=0 // loop_pre_header
    _
  $region3: #{agereg_forward.1} parent=0 // loop_header
    %s15 = sphi 0, %s19
    %p16 = scmp.ge.s32.totalorder %s15, 4
    %s25 = sphi 0, %s27
    %s28 = sphi 0, %s25
    %s29 = sphi 0, %s28
    %s45 = sphi 0, %s29
    %s49 = sphi 0, %s49
    %s51 = sphi 0, %s49
    %s52 = sphi 0, %s51
    %s66 = sphi 0, %s52
    %s70 = sphi 0, %s70
    %s72 = sphi 0, %s70
    %s73 = sphi 0, %s72
    %s87 = sphi 0, %s73
    %s91 = sphi 0, %s91
    %s93 = sphi 0, %s91
    %s94 = sphi 0, %s93
    %s108 = sphi 0, %s94
    %s112 = sphi 0, %s112
    %s114 = sphi 0, %s112
    %s115 = sphi 0, %s114
    %s129 = sphi 0, %s115
    %s133 = sphi 0, %s133
    %s135 = sphi 0, %s133
    %s136 = sphi 0, %s135
    %s150 = sphi 0, %s136
    %s154 = sphi 0, %s154
    %s156 = sphi 0, %s154
    %s157 = sphi 0, %s156
    %s171 = sphi 0, %s157
    %s177 = sphi 0, %s179
    %s180 = sphi 0, %s177
    %s181 = sphi 0, %s180
    %s197 = sphi 0, %s181
  $region4: #{agereg_forward.1} parent=0 // loop_header_branch
    %18 = sbr.rel (%p16) target = $region8
  $region5: #{agereg_forward.1} parent=0 // loop_body
    %s20 = ssub.s32 %s15, 1
    %s21 = ssub.s32 %s15, 2
    %s22 = sadd.s32 %s15, 1
    %s23 = ssub.s32 %s15, %s22
    %p24 = scmp.eq.s32.totalorder %s23, 0
    %s26 = sadd.s32 %s25, 1
    %s27 = scalar_select %p24, %s25, %s26
    %p30 = pneg %p24
    %p31 = scmp.eq.s32.totalorder %s15, 1
    %p32 = por %p30, %p31
    %p33 = scmp.ne.s32.totalorder %s25, %s28
    %p34 = scmp.eq.s32.totalorder %s15, 0
    %p35 = por %p33, %p34
    %p36 = scmp.ne.s32.totalorder %s25, %s28
    %p37 = scmp.eq.s32.totalorder %s20, 1
    %p38 = por %p36, %p37
    %p39 = scmp.ne.s32.totalorder %s28, %s29
    %p40 = scmp.eq.s32.totalorder %s20, 0
    %p41 = por %p39, %p40
    %p42 = scmp.ne.s32.totalorder %s28, %s29
    %p43 = scmp.eq.s32.totalorder %s21, 1
    %p44 = por %p42, %p43
    %p46 = scmp.ne.s32.totalorder %s29, %s45
    %p47 = scmp.eq.s32.totalorder %s21, 0
    %p48 = por %p46, %p47
    %s50 = sadd.s32 %s49, 1
    %p53 = scmp.eq.s32.totalorder %s15, 1
    %p54 = scmp.ne.s32.totalorder %s49, %s51
    %p55 = scmp.eq.s32.totalorder %s15, 0
    %p56 = por %p54, %p55
    %p57 = scmp.ne.s32.totalorder %s49, %s51
    %p58 = scmp.eq.s32.totalorder %s20, 1
    %p59 = por %p57, %p58
    %p60 = scmp.ne.s32.totalorder %s51, %s52
    %p61 = scmp.eq.s32.totalorder %s20, 0
    %p62 = por %p60, %p61
    %p63 = scmp.ne.s32.totalorder %s51, %s52
    %p64 = scmp.eq.s32.totalorder %s21, 1
    %p65 = por %p63, %p64
    %p67 = scmp.ne.s32.totalorder %s52, %s66
    %p68 = scmp.eq.s32.totalorder %s21, 0
    %p69 = por %p67, %p68
    %s71 = sadd.s32 %s70, 1
    %p74 = scmp.eq.s32.totalorder %s15, 1
    %p75 = scmp.ne.s32.totalorder %s70, %s72
    %p76 = scmp.eq.s32.totalorder %s15, 0
    %p77 = por %p75, %p76
    %p78 = scmp.ne.s32.totalorder %s70, %s72
    %p79 = scmp.eq.s32.totalorder %s20, 1
    %p80 = por %p78, %p79
    %p81 = scmp.ne.s32.totalorder %s72, %s73
    %p82 = scmp.eq.s32.totalorder %s20, 0
    %p83 = por %p81, %p82
    %p84 = scmp.ne.s32.totalorder %s72, %s73
    %p85 = scmp.eq.s32.totalorder %s21, 1
    %p86 = por %p84, %p85
    %p88 = scmp.ne.s32.totalorder %s73, %s87
    %p89 = scmp.eq.s32.totalorder %s21, 0
    %p90 = por %p88, %p89
    %s92 = sadd.s32 %s91, 1
    %p95 = scmp.eq.s32.totalorder %s15, 1
    %p96 = scmp.ne.s32.totalorder %s91, %s93
    %p97 = scmp.eq.s32.totalorder %s15, 0
    %p98 = por %p96, %p97
    %p99 = scmp.ne.s32.totalorder %s91, %s93
    %p100 = scmp.eq.s32.totalorder %s20, 1
    %p101 = por %p99, %p100
    %p102 = scmp.ne.s32.totalorder %s93, %s94
    %p103 = scmp.eq.s32.totalorder %s20, 0
    %p104 = por %p102, %p103
    %p105 = scmp.ne.s32.totalorder %s93, %s94
    %p106 = scmp.eq.s32.totalorder %s21, 1
    %p107 = por %p105, %p106
    %p109 = scmp.ne.s32.totalorder %s94, %s108
    %p110 = scmp.eq.s32.totalorder %s21, 0
    %p111 = por %p109, %p110
    %s113 = sadd.s32 %s112, 1
    %p116 = scmp.eq.s32.totalorder %s15, 1
    %p117 = scmp.ne.s32.totalorder %s112, %s114
    %p118 = scmp.eq.s32.totalorder %s15, 0
    %p119 = por %p117, %p118
    %p120 = scmp.ne.s32.totalorder %s112, %s114
    %p121 = scmp.eq.s32.totalorder %s20, 1
    %p122 = por %p120, %p121
    %p123 = scmp.ne.s32.totalorder %s114, %s115
    %p124 = scmp.eq.s32.totalorder %s20, 0
    %p125 = por %p123, %p124
    %p126 = scmp.ne.s32.totalorder %s114, %s115
    %p127 = scmp.eq.s32.totalorder %s21, 1
    %p128 = por %p126, %p127
    %p130 = scmp.ne.s32.totalorder %s115, %s129
    %p131 = scmp.eq.s32.totalorder %s21, 0
    %p132 = por %p130, %p131
    %s134 = sadd.s32 %s133, 1
    %p137 = scmp.eq.s32.totalorder %s15, 1
    %p138 = scmp.ne.s32.totalorder %s133, %s135
    %p139 = scmp.eq.s32.totalorder %s15, 0
    %p140 = por %p138, %p139
    %p141 = scmp.ne.s32.totalorder %s133, %s135
    %p142 = scmp.eq.s32.totalorder %s20, 1
    %p143 = por %p141, %p142
    %p144 = scmp.ne.s32.totalorder %s135, %s136
    %p145 = scmp.eq.s32.totalorder %s20, 0
    %p146 = por %p144, %p145
    %p147 = scmp.ne.s32.totalorder %s135, %s136
    %p148 = scmp.eq.s32.totalorder %s21, 1
    %p149 = por %p147, %p148
    %p151 = scmp.ne.s32.totalorder %s136, %s150
    %p152 = scmp.eq.s32.totalorder %s21, 0
    %p153 = por %p151, %p152
    %s155 = sadd.s32 %s154, 1
    %p158 = scmp.eq.s32.totalorder %s15, 1
    %p159 = scmp.ne.s32.totalorder %s154, %s156
    %p160 = scmp.eq.s32.totalorder %s15, 0
    %p161 = por %p159, %p160
    %p162 = scmp.ne.s32.totalorder %s154, %s156
    %p163 = scmp.eq.s32.totalorder %s20, 1
    %p164 = por %p162, %p163
    %p165 = scmp.ne.s32.totalorder %s156, %s157
    %p166 = scmp.eq.s32.totalorder %s20, 0
    %p167 = por %p165, %p166
    %p168 = scmp.ne.s32.totalorder %s156, %s157
    %p169 = scmp.eq.s32.totalorder %s21, 1
    %p170 = por %p168, %p169
    %p172 = scmp.ne.s32.totalorder %s157, %s171
    %p173 = scmp.eq.s32.totalorder %s21, 0
    %p174 = por %p172, %p173
    %s175 = ssub.s32 %s15, %s22
    %p176 = scmp.eq.s32.totalorder %s175, 0
    %s178 = sadd.s32 %s177, 1
    %s179 = scalar_select %p176, %s177, %s178
    %p182 = pneg %p176
    %p183 = scmp.eq.s32.totalorder %s15, 1
    %p184 = por %p182, %p183
    %p185 = scmp.ne.s32.totalorder %s177, %s180
    %p186 = scmp.eq.s32.totalorder %s15, 0
    %p187 = por %p185, %p186
    %p188 = scmp.ne.s32.totalorder %s177, %s180
    %p189 = scmp.eq.s32.totalorder %s20, 1
    %p190 = por %p188, %p189
    %p191 = scmp.ne.s32.totalorder %s180, %s181
    %p192 = scmp.eq.s32.totalorder %s20, 0
    %p193 = por %p191, %p192
    %p194 = scmp.ne.s32.totalorder %s180, %s181
    %p195 = scmp.eq.s32.totalorder %s21, 1
    %p196 = por %p194, %p195
    %p198 = scmp.ne.s32.totalorder %s181, %s197
    %p199 = scmp.eq.s32.totalorder %s21, 0
    %p200 = por %p198, %p199
    %p201 = scmp.le.s32.totalorder 1, %s15
    %p202 = scmp.lt.s32.totalorder %s15, 3
    %p203 = pnand %p201, %p202
    %p204 = pneg %p203
    // Predicated region
    $region9: #{agereg_forward.1} parent=5 // pred_check
      _
    $region10: #{agereg_forward.1} parent=5 // pred_check_branch
      %206 = sbr.rel (%p203) target = $region12
    $region11: #{agereg_forward.1} parent=5 // pred_region
      %s207 = ssub.s32 %s15, 1
      // Predicated region
      $region13: #{agereg_forward.1} parent=11 // pred_check
        %p208 = pneg %p62
      $region14: #{agereg_forward.1} parent=11 // pred_check_branch
        %210 = sbr.rel (%p208) target = $region16
      $region15: #{agereg_forward.1} parent=11 // pred_region
        _
      $region16: #{agereg_forward.1} parent=11 // pred_fallthru
        _
      // Predicated region
      $region17: #{agereg_forward.1} parent=11 // pred_check
        %p211 = pneg %p83
      $region18: #{agereg_forward.1} parent=11 // pred_check_branch
        %213 = sbr.rel (%p211) target = $region20
      $region19: #{agereg_forward.1} parent=11 // pred_region
        _
      $region20: #{agereg_forward.1} parent=11 // pred_fallthru
        _
      // Predicated region
      $region21: #{agereg_forward.1} parent=11 // pred_check
        %p214 = pneg %p104
      $region22: #{agereg_forward.1} parent=11 // pred_check_branch
        %216 = sbr.rel (%p214) target = $region24
      $region23: #{agereg_forward.1} parent=11 // pred_region
        _
      $region24: #{agereg_forward.1} parent=11 // pred_fallthru
        _
      // Predicated region
      $region25: #{agereg_forward.1} parent=11 // pred_check
        %p217 = pneg %p125
      $region26: #{agereg_forward.1} parent=11 // pred_check_branch
        %219 = sbr.rel (%p217) target = $region28
      $region27: #{agereg_forward.1} parent=11 // pred_region
        _
      $region28: #{agereg_forward.1} parent=11 // pred_fallthru
        _
      // Predicated region
      $region29: #{agereg_forward.1} parent=11 // pred_check
        %p220 = pneg %p146
      $region30: #{agereg_forward.1} parent=11 // pred_check_branch
        %222 = sbr.rel (%p220) target = $region32
      $region31: #{agereg_forward.1} parent=11 // pred_region
        _
      $region32: #{agereg_forward.1} parent=11 // pred_fallthru
        _
      // Predicated region
      $region33: #{agereg_forward.1} parent=11 // pred_check
        %p223 = pneg %p167
      $region34: #{agereg_forward.1} parent=11 // pred_check_branch
        %225 = sbr.rel (%p223) target = $region36
      $region35: #{agereg_forward.1} parent=11 // pred_region
        _
      $region36: #{agereg_forward.1} parent=11 // pred_fallthru
        _
    $region12: #{agereg_forward.1} parent=5 // pred_fallthru
      _
    %p226 = scmp.lt.s32.totalorder %s15, 2
    // Predicated region
    $region37: #{agereg_forward.1} parent=5 // pred_check
      %p227 = pneg %p226
    $region38: #{agereg_forward.1} parent=5 // pred_check_branch
      %229 = sbr.rel (%p227) target = $region40
    $region39: #{agereg_forward.1} parent=5 // pred_region
      // Predicated region
      $region41: #{agereg_forward.1} parent=39 // pred_check
        %p230 = pneg %p35
      $region42: #{agereg_forward.1} parent=39 // pred_check_branch
        %232 = sbr.rel (%p230) target = $region44
      $region43: #{agereg_forward.1} parent=39 // pred_region
        %p233 = scmp.lt.s32.totalorder %s15, 1
        %s234 = scalar_select %p233, %s15, 1
        %s235 = smul.addr %s234, 10
        %s236 = smul.addr %s235, 8
        %s237 = scalar_lea.vmem %s0, %s236
      $region44: #{agereg_forward.1} parent=39 // pred_fallthru
        _
    $region40: #{agereg_forward.1} parent=5 // pred_fallthru
      _
    %p238 = scmp.le.s32.totalorder 1, %s15
    %p239 = scmp.lt.s32.totalorder %s15, 3
    %p240 = pnand %p238, %p239
    %p241 = pneg %p240
    // Predicated region
    $region45: #{agereg_forward.1} parent=5 // pred_check
      _
    $region46: #{agereg_forward.1} parent=5 // pred_check_branch
      %243 = sbr.rel (%p240) target = $region48
    $region47: #{agereg_forward.1} parent=5 // pred_region
      %s244 = ssub.s32 %s15, 1
      %p245 = scmp.lt.s32.totalorder %s20, 1
      %s246 = scalar_select %p245, %s20, 1
      %s247 = smul.addr %s246, 10
      %s248 = smul.addr %s247, 8
      %s249 = scalar_lea.vmem %s0, %s248
      %p250 = pneg %p41
      %p251 = pneg %p38
      %p252 = pneg %p62
      %p253 = pneg %p59
      %p254 = pneg %p83
      %p255 = pneg %p80
      %p256 = pneg %p104
      %p257 = pneg %p101
      %p258 = pneg %p125
      %p259 = pneg %p122
      %p260 = pneg %p146
      %p261 = pneg %p143
      %p262 = pneg %p167
      %p263 = pneg %p164
      %p264 = pneg %p193
      %p265 = pneg %p190
      %p266 = scmp.lt.s32.totalorder %s20, 1
      %s267 = scalar_select %p266, %s20, 1
      %s268 = scalar_lea.vmem %s7, %s267
      %p269 = scmp.lt.s32.totalorder %s20, 1
      %s270 = scalar_select %p269, %s20, 1
      %s271 = smul.addr %s270, 10
      %s272 = smul.addr %s271, 8
      %s273 = scalar_lea.vmem %s0, %s272
      %p274 = scmp.lt.s32.totalorder %s20, 1
      %s275 = scalar_select %p274, %s20, 1
      %s276 = scalar_lea.vmem %s7, %s275
      %v277 = vld [vmem:[%s1] sm:$0xff]
      %v278 = vld [vmem:[%s273] sm:$0xff]
      %v279 = vld [vmem:[%s273 + $0x8] sm:$0xff]
      %v280 = vld [vmem:[%s273 + $0x10] sm:$0xff]
      %v281 = vld [vmem:[%s273 + $0x18] sm:$0xff]
      %v282 = vld [vmem:[%s273 + $0x20] sm:$0xff]
      %v283 = vld [vmem:[%s273 + $0x28] sm:$0xff]
      %v284 = vld [vmem:[%s273 + $0x30] sm:$0xff]
      %v285 = vld [vmem:[%s273 + $0x38] sm:$0xff]
      %v286 = vld [vmem:[%s273 + $0x40] sm:$0xff]
      %v287 = vld [vmem:[%s273 + $0x48] sm:$0xff]
      %vm288 = vcmask 326656
      %v290 = vsel %vm288, %v277, 0
      %292 = vmatprep.subr.mxu0 %v279
      %293 = vmatpush1.msra.mxu0 %v278
      %294 = vmatprep.subr.mxu0 %v281
      %295 = vmatpush1.msra.mxu0 %v280
      %296 = vmatprep.subr.mxu0 %v283
      %297 = vmatpush1.msra.mxu0 %v282
      %298 = vmatprep.subr.mxu0 %v285
      %299 = vmatpush1.msra.mxu0 %v284
      %300 = vmatprep.subr.mxu0 %v287
      %301 = vmatpush1.msra.mxu0 %v286
      %302 = vmatprep.subr.mxu0 0.0
      %303 = vmatpush1.msra.mxu0 0.0
      %304 = vmatprep.subr.mxu0 0.0
      %305 = vmatpush1.msra.mxu0 0.0
      %306 = vmatprep.subr.mxu0 0.0
      %307 = vmatpush1.msra.mxu0 0.0
      %308 = vmatprep.subr.mxu0 0.0
      %309 = vmatpush1.msra.mxu0 0.0
      %310 = vmatprep.subr.mxu0 0.0
      %311 = vmatpush1.msra.mxu0 0.0
      %312 = vmatprep.subr.mxu0 0.0
      %313 = vmatpush1.msra.mxu0 0.0
      %314 = vmatprep.subr.mxu0 0.0
      %315 = vmatpush1.msra.mxu0 0.0
      %316 = vmatprep.subr.mxu0 0.0
      %317 = vmatpush1.msra.mxu0 0.0
      %318 = vmatprep.subr.mxu0 0.0
      %319 = vmatpush1.msra.mxu0 0.0
      %320 = vmatprep.subr.mxu0 0.0
      %321 = vmatpush1.msra.mxu0 0.0
      %322 = vmatprep.subr.mxu0 0.0
      %323 = vmatpush1.msra.mxu0 0.0
      %324 = vmatprep.subr.mxu0 0.0
      %325 = vmatpush1.msra.mxu0 0.0
      %326 = vmatprep.subr.mxu0 0.0
      %327 = vmatpush1.msra.mxu0 0.0
      %328 = vmatprep.subr.mxu0 0.0
      %329 = vmatpush1.msra.mxu0 0.0
      %330 = vmatprep.subr.mxu0 0.0
      %331 = vmatpush1.msra.mxu0 0.0
      %332 = vmatprep.subr.mxu0 0.0
      %333 = vmatpush1.msra.mxu0 0.0
      %334 = vmatprep.subr.mxu0 0.0
      %335 = vmatpush1.msra.mxu0 0.0
      %336 = vmatprep.subr.mxu0 0.0
      %337 = vmatpush1.msra.mxu0 0.0
      %338 = vmatprep.subr.mxu0 0.0
      %339 = vmatpush1.msra.mxu0 0.0
      %340 = vmatprep.subr.mxu0 0.0
      %341 = vmatpush1.msra.mxu0 0.0
      %342 = vmatprep.subr.mxu0 0.0
      %343 = vmatpush1.msra.mxu0 0.0
      %344 = vmatprep.subr.mxu0 0.0
      %345 = vmatpush1.msra.mxu0 0.0
      %346 = vmatprep.subr.mxu0 0.0
      %347 = vmatpush1.msra.mxu0 0.0
      %348 = vmatprep.subr.mxu0 0.0
      %349 = vmatpush1.msra.mxu0 0.0
      %350 = vmatprep.subr.mxu0 0.0
      %351 = vmatpush1.msra.mxu0 0.0
      %352 = vmatprep.subr.mxu0 0.0
      %353 = vmatpush1.msra.mxu0 0.0
      %354 = vmatprep.subr.mxu0 0.0
      %355 = vmatpush1.msra.mxu0 0.0
      %356 = vmatprep.mubr.f32.mxu0 0.0
      %357 = vmatmul.mubr.f32.gmra.mrb[0].mxu0 %v290
      %v358 = vpop.f32.mrb[0].mxu0
      %v359 = vadd.f32 0.0, %v358
      %v360 = vpop.f32.mrb[0].mxu0
      %v361 = vadd.f32 0.0, %v360
      %362 = vdwg.mxu0
      %364 = vrot.lane.b32.xlu0 %v359, 64
      %v365 = vpop.permute.xlu0 %364
      %v367 = vmax.f32 %v359, %v365
      %v368 = vmax.f32 %v367, %v361
      %370 = vrot.lane.b32.xlu0 %v361, 64
      %v371 = vpop.permute.xlu0 %370
      %v373 = vmax.f32 %v368, %v371
      %v374 = vld [vmem:[%s2] sm:$0xff]
      %376 = vset.pattern.permute.xlu0 0
      %377 = vperm.xlu0 %376, %v374
      %v378 = vpop.permute.xlu0 %377
      %v380 = vadd.f32 %v373, %v378
      %v381 = vmax.f32 %v380, 0.0
      %v382 = vld [vmem:[%s3] sm:$0xff]
      %v383 = vld [vmem:[%s3 + $0x8] sm:$0xff]
      %v384 = vld [vmem:[%s3 + $0x10] sm:$0xff]
      %v385 = vld [vmem:[%s3 + $0x18] sm:$0xff]
      %v386 = vld [vmem:[%s3 + $0x20] sm:$0xff]
      %v387 = vld [vmem:[%s3 + $0x28] sm:$0xff]
      %v388 = vld [vmem:[%s3 + $0x30] sm:$0xff]
      %v389 = vld [vmem:[%s3 + $0x38] sm:$0xff]
      %v390 = vld [vmem:[%s3 + $0x40] sm:$0xff]
      %v391 = vld [vmem:[%s3 + $0x48] sm:$0xff]
      %v392 = vld [vmem:[%s3 + $0x50] sm:$0xff]
      %v393 = vld [vmem:[%s3 + $0x58] sm:$0xff]
      %v394 = vld [vmem:[%s3 + $0x60] sm:$0xff]
      %v395 = vld [vmem:[%s3 + $0x68] sm:$0xff]
      %v396 = vld [vmem:[%s3 + $0x70] sm:$0xff]
      %v397 = vld [vmem:[%s3 + $0x78] sm:$0xff]
      %vm398 = vcmask 523264
      %v400 = vsel %vm398, %v381, 0
      %402 = vmatprep.subr.mxu0 %v383
      %403 = vmatpush1.msra.mxu0 %v382
      %404 = vmatprep.subr.mxu0 %v385
      %405 = vmatpush1.msra.mxu0 %v384
      %406 = vmatprep.subr.mxu0 %v387
      %407 = vmatpush1.msra.mxu0 %v386
      %408 = vmatprep.subr.mxu0 %v389
      %409 = vmatpush1.msra.mxu0 %v388
      %410 = vmatprep.subr.mxu0 %v391
      %411 = vmatpush1.msra.mxu0 %v390
      %412 = vmatprep.subr.mxu0 %v393
      %413 = vmatpush1.msra.mxu0 %v392
      %414 = vmatprep.subr.mxu0 %v395
      %415 = vmatpush1.msra.mxu0 %v394
      %416 = vmatprep.subr.mxu0 %v397
      %417 = vmatpush1.msra.mxu0 %v396
      %418 = vmatprep.subr.mxu0 0.0
      %419 = vmatpush1.msra.mxu0 0.0
      %420 = vmatprep.subr.mxu0 0.0
      %421 = vmatpush1.msra.mxu0 0.0
      %422 = vmatprep.subr.mxu0 0.0
      %423 = vmatpush1.msra.mxu0 0.0
      %424 = vmatprep.subr.mxu0 0.0
      %425 = vmatpush1.msra.mxu0 0.0
      %426 = vmatprep.subr.mxu0 0.0
      %427 = vmatpush1.msra.mxu0 0.0
      %428 = vmatprep.subr.mxu0 0.0
      %429 = vmatpush1.msra.mxu0 0.0
      %430 = vmatprep.subr.mxu0 0.0
      %431 = vmatpush1.msra.mxu0 0.0
      %432 = vmatprep.subr.mxu0 0.0
      %433 = vmatpush1.msra.mxu0 0.0
      %434 = vmatprep.subr.mxu0 0.0
      %435 = vmatpush1.msra.mxu0 0.0
      %436 = vmatprep.subr.mxu0 0.0
      %437 = vmatpush1.msra.mxu0 0.0
      %438 = vmatprep.subr.mxu0 0.0
      %439 = vmatpush1.msra.mxu0 0.0
      %440 = vmatprep.subr.mxu0 0.0
      %441 = vmatpush1.msra.mxu0 0.0
      %442 = vmatprep.subr.mxu0 0.0
      %443 = vmatpush1.msra.mxu0 0.0
      %444 = vmatprep.subr.mxu0 0.0
      %445 = vmatpush1.msra.mxu0 0.0
      %446 = vmatprep.subr.mxu0 0.0
      %447 = vmatpush1.msra.mxu0 0.0
      %448 = vmatprep.subr.mxu0 0.0
      %449 = vmatpush1.msra.mxu0 0.0
      %450 = vmatprep.subr.mxu0 0.0
      %451 = vmatpush1.msra.mxu0 0.0
      %452 = vmatprep.subr.mxu0 0.0
      %453 = vmatpush1.msra.mxu0 0.0
      %454 = vmatprep.subr.mxu0 0.0
      %455 = vmatpush1.msra.mxu0 0.0
      %456 = vmatprep.subr.mxu0 0.0
      %457 = vmatpush1.msra.mxu0 0.0
      %458 = vmatprep.subr.mxu0 0.0
      %459 = vmatpush1.msra.mxu0 0.0
      %460 = vmatprep.subr.mxu0 0.0
      %461 = vmatpush1.msra.mxu0 0.0
      %462 = vmatprep.subr.mxu0 0.0
      %463 = vmatpush1.msra.mxu0 0.0
      %464 = vmatprep.subr.mxu0 0.0
      %465 = vmatpush1.msra.mxu0 0.0
      %466 = vmatprep.mubr.f32.mxu0 0.0
      %467 = vmatmul.mubr.f32.gmra.mrb[0].mxu0 %v400
      %v468 = vpop.f32.mrb[0].mxu0
      %v469 = vadd.f32 0.0, %v468
      %v470 = vpop.f32.mrb[0].mxu0
      %v471 = vadd.f32 0.0, %v470
      %472 = vdwg.mxu0
      %v474 = vrot.slane %v469, 1
      %475 = vrot.lane.b32.xlu0 %v474, 96
      %v476 = vpop.permute.xlu0 %475
      %v478 = vadd.f32 %v469, %v476
      %v479 = vrot.slane %v469, 2
      %480 = vrot.lane.b32.xlu0 %v479, 64
      %v481 = vpop.permute.xlu0 %480
      %v483 = vadd.f32 %v478, %v481
      %v484 = vrot.slane %v469, 3
      %485 = vrot.lane.b32.xlu0 %v484, 32
      %v486 = vpop.permute.xlu0 %485
      %v488 = vadd.f32 %v483, %v486
      %v490 = vrot.slane %v471, 4
      %v492 = vadd.f32 %v488, %v490
      %v493 = vrot.slane %v471, 5
      %494 = vrot.lane.b32.xlu0 %v493, 96
      %v495 = vpop.permute.xlu0 %494
      %v497 = vadd.f32 %v492, %v495
      %v498 = vrot.slane %v471, 6
      %499 = vrot.lane.b32.xlu0 %v498, 64
      %v500 = vpop.permute.xlu0 %499
      %v502 = vadd.f32 %v497, %v500
      %v503 = vrot.slane %v471, 7
      %504 = vrot.lane.b32.xlu0 %v503, 32
      %v505 = vpop.permute.xlu0 %504
      %v507 = vadd.f32 %v502, %v505
      %v508 = vld [vmem:[%s4] sm:$0x1]
      %v509 = vadd.f32 %v507, %v508
      %v510 = vmax.f32 %v509, 0.0
      %v511 = vld [vmem:[%s5] sm:$0x1]
      %v512 = vmul.f32 %v510, %v511
      %vm513 = vcmask 253952
      %v514 = vsel %vm513, %v512, 0.0
      %515 = vadd.xlane.f32.xlu0 %v514
      %v516 = vpop.xlane.xlu0 %515
      %v517 = vld [vmem:[#allocation2] sm:$0x1]
      %v518 = vadd.f32 %v516, %v517
      %vm519 = vcmask 0
      %520 = vst.msk [vmem:[%s276] sm:$0x1] %vm519, %v518
      %p521 = scmp.lt.s32.totalorder %s20, 1
      %s522 = scalar_select %p521, %s20, 1
      %s523 = scalar_lea.vmem %s7, %s522
      // Predicated region
      $region49: #{agereg_forward.1} parent=47 // pred_check
        %p524 = pneg %p190
      $region50: #{agereg_forward.1} parent=47 // pred_check_branch
        %526 = sbr.rel (%p524) target = $region52
      $region51: #{agereg_forward.1} parent=47 // pred_region
        _
      $region52: #{agereg_forward.1} parent=47 // pred_fallthru
        _
    $region48: #{agereg_forward.1} parent=5 // pred_fallthru
      _
    %p527 = scmp.le.s32.totalorder 2, %s15
    // Predicated region
    $region53: #{agereg_forward.1} parent=5 // pred_check
      %p528 = pneg %p527
    $region54: #{agereg_forward.1} parent=5 // pred_check_branch
      %530 = sbr.rel (%p528) target = $region56
    $region55: #{agereg_forward.1} parent=5 // pred_region
      %s531 = ssub.s32 %s15, 2
      // Predicated region
      $region57: #{agereg_forward.1} parent=55 // pred_check
        %p532 = pneg %p196
      $region58: #{agereg_forward.1} parent=55 // pred_check_branch
        %534 = sbr.rel (%p532) target = $region60
      $region59: #{agereg_forward.1} parent=55 // pred_region
        %p535 = scmp.lt.s32.totalorder %s21, 1
        %s536 = scalar_select %p535, %s21, 1
        %s537 = scalar_lea.vmem %s7, %s536
      $region60: #{agereg_forward.1} parent=55 // pred_fallthru
        _
    $region56: #{agereg_forward.1} parent=5 // pred_fallthru
      _
  $region6: #{agereg_forward.1} parent=0 // loop_footer
    %s19 = sadd.s32 1, %s15
  $region7: #{agereg_forward.1} parent=0 // loop_footer_branch
    %14 = sbr.rel target = $region3
  $region8: #{agereg_forward.1} parent=0 // loop_exit
    _

</llo_original>
